<compile_context>
chip_gen: v7x
topology: tpu7x:2x2x1
jax: 0.10.0
libtpu: 0.0.40
codegen_flags: <defaults>
</compile_context>

<pallas_src>
import numpy as np
import jax
import jax.numpy as jnp
from jax.experimental import pallas as pl
from jax.experimental.pallas import tpu as pltpu


# ---------------------------------------------------------------------------
# Fused kernel: 3DMM contraction + scaled rotation + translation + loss + reg
#   xf_ref   : SMEM f32[10 + n_shape]
#              [cos(roll), cos(yaw), cos(pitch), sin(roll), sin(yaw), sin(pitch),
#               T0, T1, T2, s_roll, shape[0..n_shape)]
#   slab_ref : VMEM f32[n_shape+1, 3, Np]   entry k < n_shape: basis k (selected
#              vertices, coord on sublanes); entry n_shape: mu.  Padded lanes 0.
#   tgt_ref  : VMEM f32[3, Np]              padded lanes EXACTLY zero.
#   out_ref  : SMEM f32[1, 1]
# ---------------------------------------------------------------------------
def _make_fused_kernel(n_shape, n_sel, n_pad):
    inv_loss = 500.0 / float(n_sel * 3)
    inv_reg = 0.05 / float(n_shape)
    n_pad_extra = float(n_pad - n_sel)

    def kernel(xf_ref, slab_ref, tgt_ref, out_ref):
        # --- 3DMM contraction on the stacked (3, Np) tile -------------------
        #     geo = mu_sel + sum_k shape[k] * basis_sel[k]       (VPU FMAs)
        geo = slab_ref[n_shape]                                   # mu rows (3, Np)
        for k in range(n_shape):                                  # unrolled, n_shape=8
            geo = geo + xf_ref[10 + k] * slab_ref[k]

        # --- scaled rotation composed in-kernel from SMEM scalars -----------
        cr, cy, cp = xf_ref[0], xf_ref[1], xf_ref[2]
        sr, sy, sp = xf_ref[3], xf_ref[4], xf_ref[5]
        t0, t1, t2 = xf_ref[6], xf_ref[7], xf_ref[8]
        s_abs = jnp.abs(xf_ref[9])                                # |s| == (s^2)^0.5
        # R = RZ(yaw) @ RY(pitch) @ RX(roll), scaled by |s_roll|
        r00 = s_abs * (cy * cp)
        r01 = s_abs * (cy * sp * sr - sy * cr)
        r02 = s_abs * (sy * sr + cy * sp * cr)
        r10 = s_abs * (sy * cp)
        r11 = s_abs * (cy * cr + sy * sp * sr)
        r12 = s_abs * (sy * sp * cr - cy * sr)
        r20 = -s_abs * sp
        r21 = s_abs * (cp * sr)
        r22 = s_abs * (cp * cr)

        # --- rotation + translation + squared error on the stacked tile -----
        ridx = jax.lax.broadcasted_iota(jnp.int32, (3, 1), 0)     # sublane index 0,1,2

        def col3(a, b, c):                                        # (3,1) coeff column
            return jnp.where(ridx == 0, a, jnp.where(ridx == 1, b, c))

        g0 = jnp.broadcast_to(geo[0:1, :], (3, n_pad))            # sublane broadcast
        g1 = jnp.broadcast_to(geo[1:2, :], (3, n_pad))
        g2 = jnp.broadcast_to(geo[2:3, :], (3, n_pad))
        rot = (col3(r00, r10, r20) * g0
               + col3(r01, r11, r21) * g1
               + col3(r02, r12, r22) * g2
               + col3(t0, t1, t2))                                # + T as (3,1) column
        d = rot - tgt_ref[...]

        # Padded lanes of slab/target are exactly zero, so rot there equals T and
        # d^2 there equals T^2: subtract the known contribution analytically
        # instead of masking (no iota/select on the vector path).
        total = jnp.sum(d * d)
        pad_corr = n_pad_extra * (t0 * t0 + t1 * t1 + t2 * t2)
        loss = (total - pad_corr) * inv_loss                      # mean(diff^2) * 500

        # --- regularizer from SMEM-resident shape coefficients (scalar ops) -
        # TODO(synk): for a real 3DMM (n_shape ~ 80-500) switch this and the
        #             contraction loop to lax.fori_loop(..., unroll=8) / MXU.
        reg = xf_ref[10] * xf_ref[10]
        for k in range(1, n_shape):
            reg = reg + xf_ref[10 + k] * xf_ref[10 + k]

        out_ref[0, 0] = loss + reg * inv_reg                      # + 0.05*mean(shape^2)

    return kernel


def fused_loss(xf, slab, tgt_rows, n_sel):
    n_shape = slab.shape[0] - 1
    n_pad = slab.shape[2]
    kernel = _make_fused_kernel(n_shape, n_sel, n_pad)
    out = pl.pallas_call(
        kernel,
        out_shape=jax.ShapeDtypeStruct((1, 1), jnp.float32),
        in_specs=[
            pl.BlockSpec(memory_space=pltpu.SMEM),                     # xf scalars
            pl.BlockSpec((n_shape + 1, 3, n_pad), lambda: (0, 0, 0)),  # basis+mu slab
            pl.BlockSpec((3, n_pad), lambda: (0, 0)),                  # target slab
        ],
        out_specs=pl.BlockSpec(memory_space=pltpu.SMEM),
        # Single gridless block: total resident data ~20 KB, so no grid / vmem
        # tuning is useful on v5e/v6e/v7x.  (Batching candidates along a
        # "parallel" grid axis is the lever for v7x's second TensorCore.)
    )(xf, slab, tgt_rows)
    return out[0, 0]


# ---------------------------------------------------------------------------
# Host-side static preprocessing (first_idx and the basis are fixed data).
# Padded lanes are EXACTLY zero -- the kernel's analytic pad correction and the
# geo accumulation rely on that invariant.
# ---------------------------------------------------------------------------
def prepare_selected_basis(basis_shape, mu_shape, first_idx):
    basis_shape = np.asarray(basis_shape, np.float32)
    mu_shape = np.asarray(mu_shape, np.float32)
    first_idx = np.asarray(first_idx, np.int64)

    n_shape = basis_shape.shape[0]
    n_vert = basis_shape.shape[1] // 3
    n_sel = int(first_idx.shape[0])
    n_pad = max(128, ((n_sel + 127) // 128) * 128)

    slab = np.zeros((n_shape + 1, 3, n_pad), np.float32)
    b = basis_shape.reshape(n_shape, n_vert, 3)[:, first_idx, :]   # (n_shape, n_sel, 3)
    slab[:n_shape, :, :n_sel] = np.transpose(b, (0, 2, 1))          # coord on sublanes
    slab[n_shape, :, :n_sel] = mu_shape.reshape(n_vert, 3)[first_idx].T
    return jnp.asarray(slab), n_sel, n_pad


def prepare_target(target, n_sel, n_pad):
    # Hoisted out of the per-call path (target is constant across optimizer steps).
    t = np.zeros((3, n_pad), np.float32)
    t[:, :n_sel] = np.asarray(target, np.float32).T
    return jnp.asarray(t)


# ---------------------------------------------------------------------------
# Wrapper: only cos/sin of the 3 Euler angles + one concatenate before the call
# ---------------------------------------------------------------------------
def distance_forward(params, slab, tgt_rows, n_sel):
    ang = jnp.concatenate([params["roll"], params["yaw"], params["pitch"]])
    xf = jnp.concatenate([
        jnp.cos(ang), jnp.sin(ang),
        params["T"].reshape(3), params["s_roll"].reshape(1),
        params["shape"].reshape(-1),
    ]).astype(jnp.float32)
    return fused_loss(xf, slab, tgt_rows, n_sel)


# ---------------------------------------------------------------------------
# Pure-JAX reference (numerically matches the PyTorch forward)
# ---------------------------------------------------------------------------
def get_r(roll, yaw, pitch):
    zero = jnp.zeros(1, jnp.float32)
    one = jnp.ones(1, jnp.float32)
    RX = jnp.stack([jnp.concatenate([one, zero, zero]),
                    jnp.concatenate([zero, jnp.cos(roll), -jnp.sin(roll)]),
                    jnp.concatenate([zero, jnp.sin(roll), jnp.cos(roll)])])
    RY = jnp.stack([jnp.concatenate([jnp.cos(pitch), zero, jnp.sin(pitch)]),
                    jnp.concatenate([zero, one, zero]),
                    jnp.concatenate([-jnp.sin(pitch), zero, jnp.cos(pitch)])])
    RZ = jnp.stack([jnp.concatenate([jnp.cos(yaw), -jnp.sin(yaw), zero]),
                    jnp.concatenate([jnp.sin(yaw), jnp.cos(yaw), zero]),
                    jnp.concatenate([zero, zero, one])])
    return jnp.matmul(jnp.matmul(RZ, RY), RX)


def distance_forward_ref(params, basis, target):
    R = get_r(params["roll"], params["yaw"], params["pitch"])
    geo = basis["mu_shape"] + params["shape"] @ basis["basis_shape"]
    geo = geo.reshape(-1, 3)
    s_abs = jnp.sqrt(params["s_roll"] ** 2)
    geo = (geo * s_abs) @ R.T + params["T"]
    geo = geo[basis["first_idx"]]
    dis_sub = ((geo - target) ** 2)[None].mean(-1)
    loss = dis_sub.mean() * 500.0
    reg = jnp.mean(params["shape"] ** 2)
    return loss + reg * 0.05


if __name__ == "__main__":
    # ---- synthetic basis3dmm (small, deterministic) ----
    n_shape, n_vert = 8, 64
    key = jax.random.PRNGKey(0)
    k1, k2, k3, k4 = jax.random.split(key, 4)

    basis_shape = jax.random.normal(k1, (n_shape, 3 * n_vert), jnp.float32) * 0.1
    mu_shape = jax.random.normal(k2, (3 * n_vert,), jnp.float32)

    # triangles over a subset of vertices -> first_idx via dict insertion order
    tri = np.array([[(3 * i + 5) % 48, (3 * i + 6) % 48, (3 * i + 7) % 48]
                    for i in range(48)], dtype=np.int32)
    dic_idx = {}
    for idxs in tri:
        for idx in idxs:
            dic_idx[int(idx)] = ""
    first_idx = np.array(list(dic_idx.keys()), dtype=np.int32)

    basis = {
        "basis_shape": basis_shape,
        "mu_shape": mu_shape,
        "first_idx": jnp.asarray(first_idx),
    }

    # ---- parameters as Distance.__init__ initializes them (shape nonzero so the
    #      basis / regularizer paths are actually exercised) ----
    params = {
        "roll": jnp.full((1,), 0.1, jnp.float32),
        "yaw": jnp.full((1,), -0.2, jnp.float32),
        "pitch": jnp.full((1,), 0.3, jnp.float32),
        "s_roll": jnp.full((1,), -1.1, jnp.float32),
        "T": jnp.array([0.5, -0.25, 0.75], jnp.float32),
        "shape": jax.random.normal(k4, (n_shape,), jnp.float32) * 0.5,
    }

    # ---- one-time host-side prep: merged basis+mu slab and padded target ----
    slab, n_sel, n_pad = prepare_selected_basis(
        np.asarray(basis_shape), np.asarray(mu_shape), first_idx)
    target = jax.random.normal(k3, (n_sel, 3), jnp.float32)
    tgt_rows = prepare_target(np.asarray(target), n_sel, n_pad)

    fwd = jax.jit(distance_forward, static_argnums=(3,))
    out = jax.block_until_ready(fwd(params, slab, tgt_rows, n_sel))
    ref = jax.block_until_ready(distance_forward_ref(params, basis, target))

    np.testing.assert_allclose(np.asarray(out), np.asarray(ref), rtol=1e-4, atol=1e-4)
    print("KERNEL_OK")
</pallas_src>

<mosaic_0001>
module attributes {stable_mosaic.version = 11 : i64} {
  func.func @kernel(%arg0: memref<18xf32, #tpu.memory_space<smem>>, %arg1: memref<9x3x128xf32, #tpu.memory_space<vmem>>, %arg2: memref<3x128xf32, #tpu.memory_space<vmem>>, %arg3: memref<1x1xf32, #tpu.memory_space<smem>>) attributes {dimension_semantics = [], scalar_prefetch = 0 : i64, scratch_operands = 0 : i64, tpu.core_type = #tpu.core_type<tc>} {
    %c8 = arith.constant 8 : index
    %c0 = arith.constant 0 : index
    %c0_0 = arith.constant 0 : index
    %0 = vector.load %arg1[%c8, %c0, %c0_0] : memref<9x3x128xf32, #tpu.memory_space<vmem>>, vector<1x3x128xf32>
    %1 = vector.shape_cast %0 : vector<1x3x128xf32> to vector<3x128xf32>
    %c10 = arith.constant 10 : index
    %2 = memref.load %arg0[%c10] : memref<18xf32, #tpu.memory_space<smem>>
    %c0_1 = arith.constant 0 : index
    %c0_2 = arith.constant 0 : index
    %c0_3 = arith.constant 0 : index
    %3 = vector.load %arg1[%c0_1, %c0_2, %c0_3] : memref<9x3x128xf32, #tpu.memory_space<vmem>>, vector<1x3x128xf32>
    %4 = vector.shape_cast %3 : vector<1x3x128xf32> to vector<3x128xf32>
    %5 = vector.broadcast %2 : f32 to vector<3x128xf32>
    %6 = arith.mulf %5, %4 : vector<3x128xf32>
    %7 = arith.addf %1, %6 : vector<3x128xf32>
    %c11 = arith.constant 11 : index
    %8 = memref.load %arg0[%c11] : memref<18xf32, #tpu.memory_space<smem>>
    %c1 = arith.constant 1 : index
    %c0_4 = arith.constant 0 : index
    %c0_5 = arith.constant 0 : index
    %9 = vector.load %arg1[%c1, %c0_4, %c0_5] : memref<9x3x128xf32, #tpu.memory_space<vmem>>, vector<1x3x128xf32>
    %10 = vector.shape_cast %9 : vector<1x3x128xf32> to vector<3x128xf32>
    %11 = vector.broadcast %8 : f32 to vector<3x128xf32>
    %12 = arith.mulf %11, %10 : vector<3x128xf32>
    %13 = arith.addf %7, %12 : vector<3x128xf32>
    %c12 = arith.constant 12 : index
    %14 = memref.load %arg0[%c12] : memref<18xf32, #tpu.memory_space<smem>>
    %c2 = arith.constant 2 : index
    %c0_6 = arith.constant 0 : index
    %c0_7 = arith.constant 0 : index
    %15 = vector.load %arg1[%c2, %c0_6, %c0_7] : memref<9x3x128xf32, #tpu.memory_space<vmem>>, vector<1x3x128xf32>
    %16 = vector.shape_cast %15 : vector<1x3x128xf32> to vector<3x128xf32>
    %17 = vector.broadcast %14 : f32 to vector<3x128xf32>
    %18 = arith.mulf %17, %16 : vector<3x128xf32>
    %19 = arith.addf %13, %18 : vector<3x128xf32>
    %c13 = arith.constant 13 : index
    %20 = memref.load %arg0[%c13] : memref<18xf32, #tpu.memory_space<smem>>
    %c3 = arith.constant 3 : index
    %c0_8 = arith.constant 0 : index
    %c0_9 = arith.constant 0 : index
    %21 = vector.load %arg1[%c3, %c0_8, %c0_9] : memref<9x3x128xf32, #tpu.memory_space<vmem>>, vector<1x3x128xf32>
    %22 = vector.shape_cast %21 : vector<1x3x128xf32> to vector<3x128xf32>
    %23 = vector.broadcast %20 : f32 to vector<3x128xf32>
    %24 = arith.mulf %23, %22 : vector<3x128xf32>
    %25 = arith.addf %19, %24 : vector<3x128xf32>
    %c14 = arith.constant 14 : index
    %26 = memref.load %arg0[%c14] : memref<18xf32, #tpu.memory_space<smem>>
    %c4 = arith.constant 4 : index
    %c0_10 = arith.constant 0 : index
    %c0_11 = arith.constant 0 : index
    %27 = vector.load %arg1[%c4, %c0_10, %c0_11] : memref<9x3x128xf32, #tpu.memory_space<vmem>>, vector<1x3x128xf32>
    %28 = vector.shape_cast %27 : vector<1x3x128xf32> to vector<3x128xf32>
    %29 = vector.broadcast %26 : f32 to vector<3x128xf32>
    %30 = arith.mulf %29, %28 : vector<3x128xf32>
    %31 = arith.addf %25, %30 : vector<3x128xf32>
    %c15 = arith.constant 15 : index
    %32 = memref.load %arg0[%c15] : memref<18xf32, #tpu.memory_space<smem>>
    %c5 = arith.constant 5 : index
    %c0_12 = arith.constant 0 : index
    %c0_13 = arith.constant 0 : index
    %33 = vector.load %arg1[%c5, %c0_12, %c0_13] : memref<9x3x128xf32, #tpu.memory_space<vmem>>, vector<1x3x128xf32>
    %34 = vector.shape_cast %33 : vector<1x3x128xf32> to vector<3x128xf32>
    %35 = vector.broadcast %32 : f32 to vector<3x128xf32>
    %36 = arith.mulf %35, %34 : vector<3x128xf32>
    %37 = arith.addf %31, %36 : vector<3x128xf32>
    %c16 = arith.constant 16 : index
    %38 = memref.load %arg0[%c16] : memref<18xf32, #tpu.memory_space<smem>>
    %c6 = arith.constant 6 : index
    %c0_14 = arith.constant 0 : index
    %c0_15 = arith.constant 0 : index
    %39 = vector.load %arg1[%c6, %c0_14, %c0_15] : memref<9x3x128xf32, #tpu.memory_space<vmem>>, vector<1x3x128xf32>
    %40 = vector.shape_cast %39 : vector<1x3x128xf32> to vector<3x128xf32>
    %41 = vector.broadcast %38 : f32 to vector<3x128xf32>
    %42 = arith.mulf %41, %40 : vector<3x128xf32>
    %43 = arith.addf %37, %42 : vector<3x128xf32>
    %c17 = arith.constant 17 : index
    %44 = memref.load %arg0[%c17] : memref<18xf32, #tpu.memory_space<smem>>
    %c7 = arith.constant 7 : index
    %c0_16 = arith.constant 0 : index
    %c0_17 = arith.constant 0 : index
    %45 = vector.load %arg1[%c7, %c0_16, %c0_17] : memref<9x3x128xf32, #tpu.memory_space<vmem>>, vector<1x3x128xf32>
    %46 = vector.shape_cast %45 : vector<1x3x128xf32> to vector<3x128xf32>
    %47 = vector.broadcast %44 : f32 to vector<3x128xf32>
    %48 = arith.mulf %47, %46 : vector<3x128xf32>
    %49 = arith.addf %43, %48 : vector<3x128xf32>
    %c0_18 = arith.constant 0 : index
    %50 = memref.load %arg0[%c0_18] : memref<18xf32, #tpu.memory_space<smem>>
    %c1_19 = arith.constant 1 : index
    %51 = memref.load %arg0[%c1_19] : memref<18xf32, #tpu.memory_space<smem>>
    %c2_20 = arith.constant 2 : index
    %52 = memref.load %arg0[%c2_20] : memref<18xf32, #tpu.memory_space<smem>>
    %c3_21 = arith.constant 3 : index
    %53 = memref.load %arg0[%c3_21] : memref<18xf32, #tpu.memory_space<smem>>
    %c4_22 = arith.constant 4 : index
    %54 = memref.load %arg0[%c4_22] : memref<18xf32, #tpu.memory_space<smem>>
    %c5_23 = arith.constant 5 : index
    %55 = memref.load %arg0[%c5_23] : memref<18xf32, #tpu.memory_space<smem>>
    %c6_24 = arith.constant 6 : index
    %56 = memref.load %arg0[%c6_24] : memref<18xf32, #tpu.memory_space<smem>>
    %c7_25 = arith.constant 7 : index
    %57 = memref.load %arg0[%c7_25] : memref<18xf32, #tpu.memory_space<smem>>
    %c8_26 = arith.constant 8 : index
    %58 = memref.load %arg0[%c8_26] : memref<18xf32, #tpu.memory_space<smem>>
    %c9 = arith.constant 9 : index
    %59 = memref.load %arg0[%c9] : memref<18xf32, #tpu.memory_space<smem>>
    %60 = math.absf %59 : f32
    %61 = arith.mulf %51, %52 : f32
    %62 = arith.mulf %60, %61 : f32
    %63 = arith.mulf %51, %55 : f32
    %64 = arith.mulf %63, %53 : f32
    %65 = arith.mulf %54, %50 : f32
    %66 = arith.subf %64, %65 : f32
    %67 = arith.mulf %60, %66 : f32
    %68 = arith.mulf %54, %53 : f32
    %69 = arith.mulf %51, %55 : f32
    %70 = arith.mulf %69, %50 : f32
    %71 = arith.addf %68, %70 : f32
    %72 = arith.mulf %60, %71 : f32
    %73 = arith.mulf %54, %52 : f32
    %74 = arith.mulf %60, %73 : f32
    %75 = arith.mulf %51, %50 : f32
    %76 = arith.mulf %54, %55 : f32
    %77 = arith.mulf %76, %53 : f32
    %78 = arith.addf %75, %77 : f32
    %79 = arith.mulf %60, %78 : f32
    %80 = arith.mulf %54, %55 : f32
    %81 = arith.mulf %80, %50 : f32
    %82 = arith.mulf %51, %53 : f32
    %83 = arith.subf %81, %82 : f32
    %84 = arith.mulf %60, %83 : f32
    %cst = arith.constant 0.000000e+00 : f32
    %85 = arith.subf %cst, %60 : f32
    %86 = arith.mulf %85, %55 : f32
    %87 = arith.mulf %52, %53 : f32
    %88 = arith.mulf %60, %87 : f32
    %89 = arith.mulf %52, %50 : f32
    %90 = arith.mulf %60, %89 : f32
    %91 = tpu.iota {dimensions = array<i32: 0>} : vector<3x1xi32>
    %92 = vector.extract_strided_slice %49 {offsets = [0, 0], sizes = [1, 128], strides = [1, 1]} : vector<3x128xf32> to vector<1x128xf32>
    %93 = vector.shape_cast %92 : vector<1x128xf32> to vector<1x128xf32>
    %94 = vector.broadcast %93 : vector<1x128xf32> to vector<3x128xf32>
    %95 = vector.extract_strided_slice %49 {offsets = [1, 0], sizes = [1, 128], strides = [1, 1]} : vector<3x128xf32> to vector<1x128xf32>
    %96 = vector.shape_cast %95 : vector<1x128xf32> to vector<1x128xf32>
    %97 = vector.broadcast %96 : vector<1x128xf32> to vector<3x128xf32>
    %98 = vector.extract_strided_slice %49 {offsets = [2, 0], sizes = [1, 128], strides = [1, 1]} : vector<3x128xf32> to vector<1x128xf32>
    %99 = vector.shape_cast %98 : vector<1x128xf32> to vector<1x128xf32>
    %100 = vector.broadcast %99 : vector<1x128xf32> to vector<3x128xf32>
    %c0_i32 = arith.constant 0 : i32
    %101 = vector.broadcast %c0_i32 : i32 to vector<3x1xi32>
    %102 = arith.cmpi eq, %91, %101 : vector<3x1xi32>
    %c1_i32 = arith.constant 1 : i32
    %103 = vector.broadcast %c1_i32 : i32 to vector<3x1xi32>
    %104 = arith.cmpi eq, %91, %103 : vector<3x1xi32>
    %105 = vector.broadcast %74 : f32 to vector<3x1xf32>
    %106 = vector.broadcast %86 : f32 to vector<3x1xf32>
    %107 = arith.select %104, %105, %106 : vector<3x1xi1>, vector<3x1xf32>
    %108 = vector.broadcast %62 : f32 to vector<3x1xf32>
    %109 = arith.select %102, %108, %107 : vector<3x1xi1>, vector<3x1xf32>
    %110 = vector.broadcast %109 : vector<3x1xf32> to vector<3x128xf32>
    %111 = arith.mulf %110, %94 : vector<3x128xf32>
    %c0_i32_27 = arith.constant 0 : i32
    %112 = vector.broadcast %c0_i32_27 : i32 to vector<3x1xi32>
    %113 = arith.cmpi eq, %91, %112 : vector<3x1xi32>
    %c1_i32_28 = arith.constant 1 : i32
    %114 = vector.broadcast %c1_i32_28 : i32 to vector<3x1xi32>
    %115 = arith.cmpi eq, %91, %114 : vector<3x1xi32>
    %116 = vector.broadcast %79 : f32 to vector<3x1xf32>
    %117 = vector.broadcast %88 : f32 to vector<3x1xf32>
    %118 = arith.select %115, %116, %117 : vector<3x1xi1>, vector<3x1xf32>
    %119 = vector.broadcast %67 : f32 to vector<3x1xf32>
    %120 = arith.select %113, %119, %118 : vector<3x1xi1>, vector<3x1xf32>
    %121 = vector.broadcast %120 : vector<3x1xf32> to vector<3x128xf32>
    %122 = arith.mulf %121, %97 : vector<3x128xf32>
    %123 = arith.addf %111, %122 : vector<3x128xf32>
    %c0_i32_29 = arith.constant 0 : i32
    %124 = vector.broadcast %c0_i32_29 : i32 to vector<3x1xi32>
    %125 = arith.cmpi eq, %91, %124 : vector<3x1xi32>
    %c1_i32_30 = arith.constant 1 : i32
    %126 = vector.broadcast %c1_i32_30 : i32 to vector<3x1xi32>
    %127 = arith.cmpi eq, %91, %126 : vector<3x1xi32>
    %128 = vector.broadcast %84 : f32 to vector<3x1xf32>
    %129 = vector.broadcast %90 : f32 to vector<3x1xf32>
    %130 = arith.select %127, %128, %129 : vector<3x1xi1>, vector<3x1xf32>
    %131 = vector.broadcast %72 : f32 to vector<3x1xf32>
    %132 = arith.select %125, %131, %130 : vector<3x1xi1>, vector<3x1xf32>
    %133 = vector.broadcast %132 : vector<3x1xf32> to vector<3x128xf32>
    %134 = arith.mulf %133, %100 : vector<3x128xf32>
    %135 = arith.addf %123, %134 : vector<3x128xf32>
    %c0_i32_31 = arith.constant 0 : i32
    %136 = vector.broadcast %c0_i32_31 : i32 to vector<3x1xi32>
    %137 = arith.cmpi eq, %91, %136 : vector<3x1xi32>
    %c1_i32_32 = arith.constant 1 : i32
    %138 = vector.broadcast %c1_i32_32 : i32 to vector<3x1xi32>
    %139 = arith.cmpi eq, %91, %138 : vector<3x1xi32>
    %140 = vector.broadcast %57 : f32 to vector<3x1xf32>
    %141 = vector.broadcast %58 : f32 to vector<3x1xf32>
    %142 = arith.select %139, %140, %141 : vector<3x1xi1>, vector<3x1xf32>
    %143 = vector.broadcast %56 : f32 to vector<3x1xf32>
    %144 = arith.select %137, %143, %142 : vector<3x1xi1>, vector<3x1xf32>
    %145 = vector.broadcast %144 : vector<3x1xf32> to vector<3x128xf32>
    %146 = arith.addf %135, %145 : vector<3x128xf32>
    %c0_33 = arith.constant 0 : index
    %c0_34 = arith.constant 0 : index
    %147 = vector.load %arg2[%c0_33, %c0_34] : memref<3x128xf32, #tpu.memory_space<vmem>>, vector<3x128xf32>
    %148 = arith.subf %146, %147 : vector<3x128xf32>
    %149 = arith.mulf %148, %148 : vector<3x128xf32>
    %150 = vector.shape_cast %149 : vector<3x128xf32> to vector<1x3x128xf32>
    %cst_35 = arith.constant dense<0.000000e+00> : vector<1xf32>
    %151 = vector.multi_reduction <add>, %150, %cst_35 [1, 2] : vector<1x3x128xf32> to vector<1xf32>
    %152 = vector.shape_cast %151 : vector<1xf32> to vector<1x1x1xf32>
    %153 = vector.extract %152[0, 0, 0] : f32 from vector<1x1x1xf32>
    %154 = arith.mulf %56, %56 : f32
    %155 = arith.mulf %57, %57 : f32
    %156 = arith.addf %154, %155 : f32
    %157 = arith.mulf %58, %58 : f32
    %158 = arith.addf %156, %157 : f32
    %cst_36 = arith.constant 8.000000e+01 : f32
    %159 = arith.mulf %cst_36, %158 : f32
    %160 = arith.subf %153, %159 : f32
    %cst_37 = arith.constant 3.47222233 : f32
    %161 = arith.mulf %160, %cst_37 : f32
    %c10_38 = arith.constant 10 : index
    %162 = memref.load %arg0[%c10_38] : memref<18xf32, #tpu.memory_space<smem>>
    %c10_39 = arith.constant 10 : index
    %163 = memref.load %arg0[%c10_39] : memref<18xf32, #tpu.memory_space<smem>>
    %164 = arith.mulf %162, %163 : f32
    %c11_40 = arith.constant 11 : index
    %165 = memref.load %arg0[%c11_40] : memref<18xf32, #tpu.memory_space<smem>>
    %c11_41 = arith.constant 11 : index
    %166 = memref.load %arg0[%c11_41] : memref<18xf32, #tpu.memory_space<smem>>
    %167 = arith.mulf %165, %166 : f32
    %168 = arith.addf %164, %167 : f32
    %c12_42 = arith.constant 12 : index
    %169 = memref.load %arg0[%c12_42] : memref<18xf32, #tpu.memory_space<smem>>
    %c12_43 = arith.constant 12 : index
    %170 = memref.load %arg0[%c12_43] : memref<18xf32, #tpu.memory_space<smem>>
    %171 = arith.mulf %169, %170 : f32
    %172 = arith.addf %168, %171 : f32
    %c13_44 = arith.constant 13 : index
    %173 = memref.load %arg0[%c13_44] : memref<18xf32, #tpu.memory_space<smem>>
    %c13_45 = arith.constant 13 : index
    %174 = memref.load %arg0[%c13_45] : memref<18xf32, #tpu.memory_space<smem>>
    %175 = arith.mulf %173, %174 : f32
    %176 = arith.addf %172, %175 : f32
    %c14_46 = arith.constant 14 : index
    %177 = memref.load %arg0[%c14_46] : memref<18xf32, #tpu.memory_space<smem>>
    %c14_47 = arith.constant 14 : index
    %178 = memref.load %arg0[%c14_47] : memref<18xf32, #tpu.memory_space<smem>>
    %179 = arith.mulf %177, %178 : f32
    %180 = arith.addf %176, %179 : f32
    %c15_48 = arith.constant 15 : index
    %181 = memref.load %arg0[%c15_48] : memref<18xf32, #tpu.memory_space<smem>>
    %c15_49 = arith.constant 15 : index
    %182 = memref.load %arg0[%c15_49] : memref<18xf32, #tpu.memory_space<smem>>
    %183 = arith.mulf %181, %182 : f32
    %184 = arith.addf %180, %183 : f32
    %c16_50 = arith.constant 16 : index
    %185 = memref.load %arg0[%c16_50] : memref<18xf32, #tpu.memory_space<smem>>
    %c16_51 = arith.constant 16 : index
    %186 = memref.load %arg0[%c16_51] : memref<18xf32, #tpu.memory_space<smem>>
    %187 = arith.mulf %185, %186 : f32
    %188 = arith.addf %184, %187 : f32
    %c17_52 = arith.constant 17 : index
    %189 = memref.load %arg0[%c17_52] : memref<18xf32, #tpu.memory_space<smem>>
    %c17_53 = arith.constant 17 : index
    %190 = memref.load %arg0[%c17_53] : memref<18xf32, #tpu.memory_space<smem>>
    %191 = arith.mulf %189, %190 : f32
    %192 = arith.addf %188, %191 : f32
    %cst_54 = arith.constant 6.250000e-03 : f32
    %193 = arith.mulf %192, %cst_54 : f32
    %194 = arith.addf %161, %193 : f32
    %c0_55 = arith.constant 0 : index
    %c0_56 = arith.constant 0 : index
    %195 = memref.load %arg3[%c0_55, %c0_56] : memref<1x1xf32, #tpu.memory_space<smem>>
    memref.store %194, %arg3[%c0_55, %c0_56] : memref<1x1xf32, #tpu.memory_space<smem>>
    return
  }
}

</mosaic_0001>

<llo_original>
// kernel: cos.1
$region0: #{cos.1}
  #allocation0 [shape = 's32[1]{0}', space=sflag, size = 0x4, scoped, tag = 'scoped memory for cos.1']
  %s0 = inlined_call_operand.vmem [shape: f32[3], index: 0, kind: input, shape index: {}]
  %s1 = inlined_call_operand.vmem [shape: f32[3], index: 1, kind: output, shape index: {}]
  %v2 = vld [vmem:[%s0] sm:$0x1]
  %v3 = vand.u32 2147483647, %v2
  %vm4 = vcmp.le.f32.partialorder %v3, 0.7853982
  %vm5 = vcmp.lt.s32.totalorder %v2, 0
  %v6 = vand.u32 %v2, 2139095040
  %v7 = vshrl.u32 %v6, 23
  %v8 = vsub.s32 %v7, 127
  %v9 = vand.u32 2147483647, %v2
  %v10 = vand.u32 %v9, 8388607
  %v11 = vor.u32 %v10, 8388608
  %v12 = vsub.s32 0, %v11
  %v13 = vadd.s32 %v8, 1
  %vm14 = vcmp.gt.s32.totalorder %v13, 0
  %v15 = vsel %vm14, %v13, 0
  %v16 = vshrl.u32 %v15, 5
  %v17 = vand.u32 %v15, 31
  %v18 = vsub.s32 32, %v17
  %v19 = vshrl.u32 683565275, %v18
  %v20 = vshll.u32 683565275, %v17
  %v21 = vshrl.u32 2475754826, %v18
  %v22 = vor.u32 %v20, %v21
  %v23 = vshll.u32 2475754826, %v17
  %v24 = vshrl.u32 2131351028, %v18
  %v25 = vor.u32 %v23, %v24
  %v26 = vshll.u32 2131351028, %v17
  %v27 = vshrl.u32 2102212464, %v18
  %v28 = vor.u32 %v26, %v27
  %v29 = vshll.u32 2102212464, %v17
  %v30 = vshrl.u32 920167782, %v18
  %v31 = vor.u32 %v29, %v30
  %v32 = vshll.u32 920167782, %v17
  %v33 = vshrl.u32 1326507024, %v18
  %v34 = vor.u32 %v32, %v33
  %vm35 = vcmp.lt.s32.totalorder %v16, 1
  %vm36 = vcmp.lt.s32.totalorder %v16, 2
  %vm37 = vcmp.lt.s32.totalorder %v16, 3
  %vm38 = vcmp.lt.s32.totalorder %v16, 4
  %v39 = vsel %vm35, %v19, %v22
  %v40 = vsel %vm38, %v28, 2102212464
  %v41 = vsel %vm37, %v25, %v40
  %v42 = vsel %vm36, %v39, %v41
  %v43 = vsel %vm35, %v22, %v25
  %v44 = vsel %vm38, %v31, 920167782
  %v45 = vsel %vm37, %v28, %v44
  %v46 = vsel %vm36, %v43, %v45
  %v47 = vsel %vm35, %v25, %v28
  %v48 = vsel %vm38, %v34, 1326507024
  %v49 = vsel %vm37, %v31, %v48
  %v50 = vsel %vm36, %v47, %v49
  %v51 = vshll.u32 %v11, 8
  %v52 = vmul.u32.u64.compose %v51, %v50
  %v53 = vextract.low.u32 %v52
  %v54 = vextract.high.u32 %v52
  %v55 = vmul.u32.u64.compose %v51, %v46
  %v56 = vextract.low.u32 %v55
  %v57 = vextract.high.u32 %v55
  %v58 = vmul.u32 %v51, %v42
  %v59 = vadd.s32 %v54, %v56
  %vm60 = vc.u32 %v54, %v56
  %v61 = vadd.s32 %v57, 1
  %v62 = vsel %vm60, %v61, %v57
  %v63 = vadd.s32 %v58, %v62
  %v64 = vadd.s32 %v63, 536870912
  %v65 = vshrl.u32 %v64, 30
  %v66 = vshll.u32 %v65, 30
  %v67 = vsub.s32 %v63, %v66
  %vm68 = vcmp.lt.s32.totalorder %v67, 0
  %v69 = vsub.s32 0, %v67
  %v70 = vsel %vm68, %v69, %v67
  %v71 = vclz %v70
  %v72 = vsub.s32 %v71, 2
  %vm73 = vcmp.gt.s32.totalorder 0, %v72
  %v74 = vsel %vm73, 0, %v72
  %v75 = vsub.s32 32, %v74
  %v76 = vshll.u32 %v67, %v74
  %v77 = vshrl.u32 %v59, %v75
  %v78 = vor.u32 %v76, %v77
  %v79 = vsub.s32 4294967266, %v74
  %v80 = vadd.s32 %v79, 127
  %v81 = vshll.u32 %v80, 23
  %v82 = vor.u32 4788187, %v81
  %v83 = vand.u32 2147483647, %v82
  %v85 = vcvt.s32.f32 %v78
  %v86 = vmul.f32 %v85, %v83
  %v87 = vxor.u32 %v86, 2147483648
  %v88 = vsel %vm5, %v87, %v86
  %v89 = vsub.s32 4, %v65
  %v90 = vsel %vm5, %v89, %v65
  %v91 = vsel %vm4, %v2, %v88
  %v92 = vsel %vm4, 0, %v90
  %v93 = vcosq.f32.pop %v91
  %v94 = vsinq.f32.pop %v91
  %vm95 = vweird.f32 %v2
  %v96 = vand.u32 %v92, 3
  %vm97 = vcmp.lt.s32.totalorder %v96, 2
  %vm98 = vcmp.eq.s32.totalorder %v96, 0
  %v99 = vxor.u32 %v94, 2147483648
  %v100 = vsel %vm98, %v93, %v99
  %vm101 = vcmp.eq.s32.totalorder %v96, 2
  %v102 = vxor.u32 %v93, 2147483648
  %v103 = vsel %vm101, %v102, %v94
  %v104 = vsel %vm97, %v100, %v103
  %v105 = vsel %vm95, nan, %v104
  %106 = vst [vmem:[%s1] sm:$0x1] %v105

// kernel: distance_forward.1
$region0: #{distance_forward.1}
  #allocation0 [shape = 'u32[]', space=smem, size = 0x4, offset = 0x4, fixed_abs, tag = 'smem constant byte address 0x4 - core index']
  #allocation1 [shape = 'u32[144,128]{1,0:T(1,128)}', space=vmem, size = 0x12000, scoped, tag = 'internal scratch']
  %s0 = inlined_call_operand.vmem [shape: f32[18], index: 0, kind: input, shape index: {}]
  %s1 = inlined_call_operand.vmem [shape: f32[9,3,128], index: 1, kind: input, shape index: {}]
  %s2 = inlined_call_operand.vmem [shape: f32[3,128], index: 2, kind: input, shape index: {}]
  %s3 = inlined_call_operand.hbm [shape: f32[1,1], index: 3, kind: output, shape index: {}]
  %s4 = sld [smem:[#allocation0]]
  $region26: #{distance_forward.1} parent=0
    _
  %s6 = ssub.s32 1, %s4
  %s7 = scalar_select 0, %s6, %s4
  $region1: #{distance_forward.1} parent=0
    #allocation2 [shape = 'u8[512]{0}', space=smem, size = 0x200, scoped, tag = 'input window, operand 0, single buffered']
    #allocation3 [shape = 's32[1]{0}', space=sflag, size = 0x4, scoped, tag = 'scoped memory for distance_forward.1']
    #allocation4 [shape = 's32[1]{0}', space=sflag, size = 0x4, scoped, tag = 'scoped memory for distance_forward.1']
    #allocation5 [shape = 'u8[512]{0}', space=smem, size = 0x200, scoped, tag = 'output window, operand 0, single buffered']
    %8 = vsyncpa [#allocation4], 0
    %9 = vsyncpa [#allocation3], 0
    // Predicated region
    $region2: #{distance_forward.1} parent=1 // pred_check
      _
    $region3: #{distance_forward.1} parent=1 // pred_check_branch
      %11 = sbr.rel (0) target = $region5
    $region4: #{distance_forward.1} parent=1 // pred_region
      %s13 = ssub.s32 16, 16
      %14 = vsyncadd [#allocation4], %s13
      %s16 = sshll.u32 %s0, 4
      %s17 = int_to_ptr.vmem [resolvable:$true] %s16
      %19 = dma.vmem_to_smem %s17, 16, [#allocation2], [#allocation4]
    $region5: #{distance_forward.1} parent=1 // pred_fallthru
      _
    // Predicated region
    $region6: #{distance_forward.1} parent=1 // pred_check
      _
    $region7: #{distance_forward.1} parent=1 // pred_check_branch
      %21 = sbr.rel (0) target = $region9
    $region8: #{distance_forward.1} parent=1 // pred_region
      _
    $region9: #{distance_forward.1} parent=1 // pred_fallthru
      _
    // Predicated region
    $region10: #{distance_forward.1} parent=1 // pred_check
      _
    $region11: #{distance_forward.1} parent=1 // pred_check_branch
      %23 = sbr.rel (0) target = $region13
    $region12: #{distance_forward.1} parent=1 // pred_region
      _
    $region13: #{distance_forward.1} parent=1 // pred_fallthru
      _
    // Predicated region
    $region14: #{distance_forward.1} parent=1 // pred_check
      _
    $region15: #{distance_forward.1} parent=1 // pred_check_branch
      %25 = sbr.rel (0) target = $region17
    $region16: #{distance_forward.1} parent=1 // pred_region
      %26 = dma.done [#allocation4], 16
    $region17: #{distance_forward.1} parent=1 // pred_fallthru
      _
    %27 = sfence
    %s28 = scalar_lea.vmem %s1, 32
    %v29 = vld [vmem:[%s28] sm:$0x7]
    %s30 = sld [smem:[#allocation2 + $0xa]]
    %v31 = vld [vmem:[%s1] sm:$0x7]
    %v32 = vstv %s30
    %v33 = vmul.f32 %v32, %v31
    %v34 = vadd.f32 %v29, %v33
    %s35 = sld [smem:[#allocation2 + $0xb]]
    %s36 = scalar_lea.vmem %s1, 4
    %v37 = vld [vmem:[%s36] sm:$0x7]
    %v38 = vstv %s35
    %v39 = vmul.f32 %v38, %v37
    %v40 = vadd.f32 %v34, %v39
    %s41 = sld [smem:[#allocation2 + $0xc]]
    %s42 = scalar_lea.vmem %s1, 8
    %v43 = vld [vmem:[%s42] sm:$0x7]
    %v44 = vstv %s41
    %v45 = vmul.f32 %v44, %v43
    %v46 = vadd.f32 %v40, %v45
    %s47 = sld [smem:[#allocation2 + $0xd]]
    %s48 = scalar_lea.vmem %s1, 12
    %v49 = vld [vmem:[%s48] sm:$0x7]
    %v50 = vstv %s47
    %v51 = vmul.f32 %v50, %v49
    %v52 = vadd.f32 %v46, %v51
    %s53 = sld [smem:[#allocation2 + $0xe]]
    %s54 = scalar_lea.vmem %s1, 16
    %v55 = vld [vmem:[%s54] sm:$0x7]
    %v56 = vstv %s53
    %v57 = vmul.f32 %v56, %v55
    %v58 = vadd.f32 %v52, %v57
    %s59 = sld [smem:[#allocation2 + $0xf]]
    %s60 = scalar_lea.vmem %s1, 20
    %v61 = vld [vmem:[%s60] sm:$0x7]
    %v62 = vstv %s59
    %v63 = vmul.f32 %v62, %v61
    %v64 = vadd.f32 %v58, %v63
    %s65 = sld [smem:[#allocation2 + $0x10]]
    %s66 = scalar_lea.vmem %s1, 24
    %v67 = vld [vmem:[%s66] sm:$0x7]
    %v68 = vstv %s65
    %v69 = vmul.f32 %v68, %v67
    %v70 = vadd.f32 %v64, %v69
    %s71 = sld [smem:[#allocation2 + $0x11]]
    %s72 = scalar_lea.vmem %s1, 28
    %v73 = vld [vmem:[%s72] sm:$0x7]
    %v74 = vstv %s71
    %v75 = vmul.f32 %v74, %v73
    %v76 = vadd.f32 %v70, %v75
    %s77 = sld [smem:[#allocation2]]
    %s78 = sld [smem:[#allocation2 + $0x1]]
    %s79 = sld [smem:[#allocation2 + $0x2]]
    %s80 = sld [smem:[#allocation2 + $0x3]]
    %s81 = sld [smem:[#allocation2 + $0x4]]
    %s82 = sld [smem:[#allocation2 + $0x5]]
    %s83 = sld [smem:[#allocation2 + $0x6]]
    %s84 = sld [smem:[#allocation2 + $0x7]]
    %s85 = sld [smem:[#allocation2 + $0x8]]
    %s86 = sld [smem:[#allocation2 + $0x9]]
    %s87 = sand.u32 2147483647, %s86
    %s88 = smul.f32 %s78, %s79
    %s89 = smul.f32 %s87, %s88
    %s90 = smul.f32 %s78, %s82
    %s91 = smul.f32 %s90, %s80
    %s92 = smul.f32 %s81, %s77
    %s93 = ssub.f32 %s91, %s92
    %s94 = smul.f32 %s87, %s93
    %s95 = smul.f32 %s81, %s80
    %s96 = smul.f32 %s90, %s77
    %s97 = sadd.f32 %s95, %s96
    %s98 = smul.f32 %s87, %s97
    %s99 = smul.f32 %s81, %s79
    %s100 = smul.f32 %s87, %s99
    %s101 = smul.f32 %s78, %s77
    %s102 = smul.f32 %s81, %s82
    %s103 = smul.f32 %s102, %s80
    %s104 = sadd.f32 %s101, %s103
    %s105 = smul.f32 %s87, %s104
    %s106 = smul.f32 %s102, %s77
    %s107 = smul.f32 %s78, %s80
    %s108 = ssub.f32 %s106, %s107
    %s109 = smul.f32 %s87, %s108
    %s110 = ssub.f32 0.0, %s87
    %s111 = smul.f32 %s110, %s82
    %s112 = smul.f32 %s79, %s80
    %s113 = smul.f32 %s87, %s112
    %s114 = smul.f32 %s79, %s77
    %s115 = smul.f32 %s87, %s114
    %v116 = vlaneseq
    %v117 = vshrl.u32 %v116, 7
    %v118 = vlaneseq
    %v119 = vshrl.u32 %v118, 7
    %v120 = vsub.s32 0, %v119
    %v121 = vrot.slane %v76, %v120
    %v122 = vlaneseq
    %v123 = vshrl.u32 %v122, 7
    %v124 = vsub.s32 1, %v123
    %v125 = vrot.slane %v76, %v124
    %v126 = vlaneseq
    %v127 = vshrl.u32 %v126, 7
    %v128 = vsub.s32 2, %v127
    %v129 = vrot.slane %v76, %v128
    %vm130 = vcmp.eq.s32.totalorder %v117, 0
    %vm131 = vcmp.eq.s32.totalorder %v117, 1
    %v132 = vstv %s100
    %v133 = vstv %s111
    %v134 = vsel %vm131, %v132, %v133
    %v135 = vstv %s89
    %v136 = vsel %vm130, %v135, %v134
    %v137 = vmul.f32 %v136, %v121
    %v138 = vstv %s105
    %v139 = vstv %s113
    %v140 = vsel %vm131, %v138, %v139
    %v141 = vstv %s94
    %v142 = vsel %vm130, %v141, %v140
    %v143 = vmul.f32 %v142, %v125
    %v144 = vadd.f32 %v137, %v143
    %v145 = vstv %s109
    %v146 = vstv %s115
    %v147 = vsel %vm131, %v145, %v146
    %v148 = vstv %s98
    %v149 = vsel %vm130, %v148, %v147
    %v150 = vmul.f32 %v149, %v129
    %v151 = vadd.f32 %v144, %v150
    %v152 = vstv %s84
    %v153 = vstv %s85
    %v154 = vsel %vm131, %v152, %v153
    %v155 = vstv %s83
    %v156 = vsel %vm130, %v155, %v154
    %v157 = vadd.f32 %v151, %v156
    %v158 = vld [vmem:[%s2] sm:$0x7]
    %v159 = vsub.f32 %v157, %v158
    %v160 = vmul.f32 %v159, %v159
    %vm161 = vcmask 1042432
    %v162 = vsel %vm161, %v160, 0.0
    %163 = vadd.xlane.f32.xlu0 %v162
    %v164 = vpop.xlane.xlu0 %163
    %v165 = vrot.slane %v164, 4
    %v166 = vadd.f32 %v164, %v165
    %v167 = vrot.slane %v166, 2
    %v168 = vadd.f32 %v166, %v167
    %v169 = vrot.slane %v168, 1
    %v170 = vadd.f32 %v168, %v169
    %s171 = vtos %v170
    %s172 = smul.f32 %s83, %s83
    %s173 = smul.f32 %s84, %s84
    %s174 = sadd.f32 %s172, %s173
    %s175 = smul.f32 %s85, %s85
    %s176 = sadd.f32 %s174, %s175
    %s177 = smul.f32 %s176, 80.0
    %s178 = ssub.f32 %s171, %s177
    %s179 = smul.f32 %s178, 3.4722223
    %s180 = smul.f32 %s30, %s30
    %s181 = smul.f32 %s35, %s35
    %s182 = sadd.f32 %s180, %s181
    %s183 = smul.f32 %s41, %s41
    %s184 = sadd.f32 %s182, %s183
    %s185 = smul.f32 %s47, %s47
    %s186 = sadd.f32 %s184, %s185
    %s187 = smul.f32 %s53, %s53
    %s188 = sadd.f32 %s186, %s187
    %s189 = smul.f32 %s59, %s59
    %s190 = sadd.f32 %s188, %s189
    %s191 = smul.f32 %s65, %s65
    %s192 = sadd.f32 %s190, %s191
    %s193 = smul.f32 %s71, %s71
    %s194 = sadd.f32 %s192, %s193
    %s195 = smul.f32 %s194, 0.00625
    %s196 = sadd.f32 %s179, %s195
    %s197 = scalar_lea.smem [#allocation5], 0
    %198 = sst [smem:[%s197]] %s196
    // Predicated region
    $region18: #{distance_forward.1} parent=1 // pred_check
      _
    $region19: #{distance_forward.1} parent=1 // pred_check_branch
      %200 = sbr.rel (0) target = $region21
    $region20: #{distance_forward.1} parent=1 // pred_region
      %s202 = ssub.s32 16, 16
      %203 = vsyncadd [#allocation3], %s202
      %206 = dma.smem_to_hbm [#allocation5], 16, %s3, [#allocation3]
    $region21: #{distance_forward.1} parent=1 // pred_fallthru
      _
    // Predicated region
    $region22: #{distance_forward.1} parent=1 // pred_check
      _
    $region23: #{distance_forward.1} parent=1 // pred_check_branch
      %208 = sbr.rel (0) target = $region25
    $region24: #{distance_forward.1} parent=1 // pred_region
      %209 = dma.done [#allocation3], 16
    $region25: #{distance_forward.1} parent=1 // pred_fallthru
      _
    %210 = sfence
    %211 = vsyncpa [#allocation3], 1
    %212 = vsyncpa [#allocation4], 1

</llo_original>
